<compile_context>
chip_gen: v6e
topology: v6e:2x2x1
jax: 0.10.0
libtpu: 0.0.40
codegen_flags: <defaults>
</compile_context>

<pallas_src>
import jax
import jax.numpy as jnp
from jax.experimental import pallas as pl


# ----------------------------- model dimensions ------------------------------
B = 2          # batch
S = 8          # question sequence length
V = 50         # vocab size
E = 32         # word-embedding size
D_IMG = 32     # image feature size per region (stand-in for 2048)
R = 16         # number of image regions (e.g. 4x4 grid)
H = 32         # common hidden size (stand-in for text_emb_size / mlp dim)
K = 32         # attention hidden size
A = 16         # number of answers
OUT_W = 128    # lane-dense packed output width (logits | attn | zero pad)
OUT_ROWS = 8   # output sublane padding -> full unmasked (8,128) store
SLAB_ROWS = 5 * H   # packed weight slab: 5 row-blocks of 32 rows each
SLAB_COLS = 128


# --------------------------------- kernel ------------------------------------
def san_kernel(q_emb_ref, img_ref, w_ref, b_ref, out_ref):
    # ---- unpack the weight slab (row-blocked, lane offset 0) ----------------
    wq = w_ref[0 * H:1 * H, 0:H]            # [E, H]
    wi = w_ref[1 * H:2 * H, 0:H]            # [D_IMG, H]
    wia = w_ref[2 * H:3 * H, 0:K]           # [H, K]
    wqa = w_ref[3 * H:4 * H, 0:K]           # [H, K]
    wc = w_ref[4 * H:5 * H, 0:A]            # [H, A]

    # ---- unpack the bias tile ------------------------------------------------
    bq = b_ref[0:1, 0:H]                    # [1, H]
    bi = b_ref[1:2, 0:H]                    # [1, H]
    ba = b_ref[2:3, 0:K]                    # [1, K]
    bc = b_ref[3:4, 0:A]                    # [1, A]
    wp = b_ref[5:6, 0:K]                    # [1, K] score vector (folded into bias tile)

    # ---- question encoder: bag-of-words mean + tanh(linear) ------------------
    # TODO(synk): the reference QuestionEmbedding is an RNN (skip-thought /
    # LSTM); a recurrent cell has no clean small-kernel equivalent here, so a
    # mean-pooled bag-of-words encoder with the same output shape is used.
    q_mean = jnp.mean(q_emb_ref[...], axis=1)                                    # [B, E]
    u = jnp.tanh(jnp.dot(q_mean, wq, preferred_element_type=jnp.float32) + bq)   # [B, H]

    # ---- image encoder: tanh(linear) over all B*R region rows at once --------
    img_flat = img_ref[...].reshape(B * R, D_IMG)          # leading-dim merge: free
    v_flat = jnp.tanh(
        jnp.dot(img_flat, wi, preferred_element_type=jnp.float32) + bi)          # [B*R, H]

    # ---- SAN attention: two matmuls, question projection once per batch row --
    hv = jnp.dot(v_flat, wia, preferred_element_type=jnp.float32).reshape(B, R, K)
    hu = jnp.dot(u, wqa, preferred_element_type=jnp.float32)                     # [B, K]
    h_a = jnp.tanh(hv + hu[:, None, :] + ba)                                     # [B, R, K]

    # Score pre-activation; '+ bp' is dropped (a per-row constant cancels in
    # the softmax over regions).
    t = h_a * wp                                                                 # [B, R, K]

    # (a) lane-dense softmax -> returned attention map p [B, R] (exact divide)
    scores = jnp.sum(t, axis=-1)                                                 # [B, R]
    m = jnp.max(scores, axis=-1, keepdims=True)                                  # [B, 1]
    e = jnp.exp(scores - m)                                                      # [B, R]
    p = e / jnp.sum(e, axis=-1, keepdims=True)                                   # [B, R]

    # (b) sublane-layout softmax [B, R, 1] -> weights for the attended sum.
    #     Recomputed from the same t with keepdims reduces only, so no
    #     lane<->sublane relayout of p is ever needed.
    s3 = jnp.sum(t, axis=-1, keepdims=True)                                      # [B, R, 1]
    m3 = jnp.max(s3, axis=1, keepdims=True)                                      # [B, 1, 1]
    e3 = jnp.exp(s3 - m3)                                                        # [B, R, 1]
    p3 = e3 / jnp.sum(e3, axis=1, keepdims=True)                                 # [B, R, 1]

    # ---- attended sum: VPU multiply + sublane reduce (no M=1 MXU matmul) -----
    v_i = v_flat.reshape(B, R, H)                                                # [B, R, H]
    v_tilde = jnp.sum(p3 * v_i, axis=1)                                          # [B, H]
    u_final = u + v_tilde                                                        # [B, H]

    # ---- answer classifier ----------------------------------------------------
    logits = jnp.dot(u_final, wc, preferred_element_type=jnp.float32) + bc       # [B, A]

    # ---- single unmasked (8, 128) store: [logits | attn | pad], row-padded ----
    lane_pad = jnp.zeros((B, OUT_W - A - R), jnp.float32)
    rows = jnp.concatenate([logits, p, lane_pad], axis=-1)                       # [B, 128]
    row_pad = jnp.zeros((OUT_ROWS - B, OUT_W), jnp.float32)
    out_ref[...] = jnp.concatenate([rows, row_pad], axis=0)                      # [8, 128]


# ----------------------------- one-time packing -------------------------------
def prepare_params(params):
    """Pack all weights/biases into two constant slabs. Called once at init,
    NOT inside the per-call forward path."""
    (wq, bq, wi, bi, wia, wqa, ba, wp, bp, wc, bc) = params
    del bp  # provably cancels in the softmax over regions
    assert E == D_IMG == H == K  # all packed weights share the 32-row axis

    w_slab = jnp.zeros((SLAB_ROWS, SLAB_COLS), jnp.float32)
    w_slab = w_slab.at[0 * H:1 * H, 0:H].set(wq)
    w_slab = w_slab.at[1 * H:2 * H, 0:H].set(wi)
    w_slab = w_slab.at[2 * H:3 * H, 0:K].set(wia)
    w_slab = w_slab.at[3 * H:4 * H, 0:K].set(wqa)
    w_slab = w_slab.at[4 * H:5 * H, 0:A].set(wc)

    biases = jnp.zeros((8, 128), jnp.float32)
    biases = biases.at[0, :H].set(bq.reshape(H))
    biases = biases.at[1, :H].set(bi.reshape(H))
    biases = biases.at[2, :K].set(ba.reshape(K))
    biases = biases.at[3, :A].set(bc.reshape(A))
    biases = biases.at[5, :K].set(wp.reshape(K))   # wp folded into the bias tile
    return w_slab, biases


# -------------------------------- wrapper -------------------------------------
@jax.jit
def san_baseline_forward(q_emb, img, w_slab, biases):
    """q_emb: [B,S,E] f32 (already-embedded question), img: [B,R,D_IMG] f32.
    w_slab / biases come pre-packed from prepare_params()."""
    packed = pl.pallas_call(
        san_kernel,
        out_shape=jax.ShapeDtypeStruct((OUT_ROWS, OUT_W), jnp.float32),
        # No grid: single invocation, whole (tiny) arrays resident in VMEM,
        # nothing to double-buffer.
    )(q_emb, img, w_slab, biases)
    logits = packed[:B, :A]
    attn = packed[:B, A:A + R]
    return logits, attn


def init_params(key):
    ks = jax.random.split(key, 12)
    scale = 0.05
    wq = scale * jax.random.normal(ks[0], (E, H), jnp.float32)
    bq = jnp.zeros((1, H), jnp.float32)
    wi = scale * jax.random.normal(ks[1], (D_IMG, H), jnp.float32)
    bi = jnp.zeros((1, H), jnp.float32)
    wia = scale * jax.random.normal(ks[2], (H, K), jnp.float32)
    wqa = scale * jax.random.normal(ks[3], (H, K), jnp.float32)
    ba = jnp.zeros((1, K), jnp.float32)
    wp = scale * jax.random.normal(ks[4], (K, 1), jnp.float32)
    bp = jnp.zeros((1, 1), jnp.float32)
    wc = scale * jax.random.normal(ks[5], (H, A), jnp.float32)
    bc = jnp.zeros((1, A), jnp.float32)
    emb_table = scale * jax.random.normal(ks[6], (V, E), jnp.float32)
    return (wq, bq, wi, bi, wia, wqa, ba, wp, bp, wc, bc), emb_table


def san_reference(q_emb, img, params):
    """Pure-JAX reference of the same forward math."""
    (wq, bq, wi, bi, wia, wqa, ba, wp, bp, wc, bc) = params
    q_mean = jnp.mean(q_emb, axis=1)                                      # [B, E]
    u = jnp.tanh(q_mean @ wq + bq)                                        # [B, H]
    v_i = jnp.tanh(jnp.einsum('brd,dh->brh', img, wi) + bi)               # [B, R, H]
    h_a = jnp.tanh(jnp.einsum('brh,hk->brk', v_i, wia)
                   + (u @ wqa)[:, None, :] + ba)                          # [B, R, K]
    scores = jnp.einsum('brk,ko->bro', h_a, wp)[..., 0] + bp.reshape(())  # [B, R]
    p = jax.nn.softmax(scores, axis=-1)                                   # [B, R]
    v_tilde = jnp.einsum('br,brh->bh', p, v_i)                            # [B, H]
    logits = (u + v_tilde) @ wc + bc                                      # [B, A]
    return logits, p


if __name__ == "__main__":
    key = jax.random.PRNGKey(0)
    k_param, k_img, k_q = jax.random.split(key, 3)

    params, emb_table = init_params(k_param)
    w_slab, biases = prepare_params(params)   # one-time packing (not per-call)

    # image region features [B, R, D_IMG]
    img = jax.random.normal(k_img, (B, R, D_IMG), jnp.float32)

    # one question shared across the batch (mirrors .expand() in the reference)
    quest_vocab_vec = jax.random.randint(k_q, (S,), 0, V, dtype=jnp.int32)
    question = jnp.broadcast_to(quest_vocab_vec[None, :], (B, S))          # [B, S]

    # embedding lookup (gather) kept in JAX glue
    q_emb = emb_table[question]                                            # [B, S, E]

    logits, attn = san_baseline_forward(q_emb, img, w_slab, biases)
    jax.block_until_ready((logits, attn))

    assert logits.shape == (B, A) and attn.shape == (B, R)
    # attention rows sum to 1 (exact divide in the kernel now)
    assert jnp.allclose(jnp.sum(attn, axis=-1), 1.0, atol=1e-4)

    ref_logits, ref_attn = san_reference(q_emb, img, params)
    assert jnp.allclose(logits, ref_logits, atol=1e-3, rtol=1e-3)
    assert jnp.allclose(attn, ref_attn, atol=1e-3, rtol=1e-3)

    print("KERNEL_OK")
</pallas_src>

<mosaic_0001>
module attributes {stable_mosaic.version = 11 : i64} {
  func.func @san_kernel(%arg0: memref<2x8x32xf32, #tpu.memory_space<vmem>>, %arg1: memref<2x16x32xf32, #tpu.memory_space<vmem>>, %arg2: memref<160x128xf32, #tpu.memory_space<vmem>>, %arg3: memref<8x128xf32, #tpu.memory_space<vmem>>, %arg4: memref<8x128xf32, #tpu.memory_space<vmem>>) attributes {dimension_semantics = [], scalar_prefetch = 0 : i64, scratch_operands = 0 : i64, tpu.core_type = #tpu.core_type<tc>} {
    %c0 = arith.constant 0 : index
    %c0_0 = arith.constant 0 : index
    %0 = vector.load %arg2[%c0, %c0_0] : memref<160x128xf32, #tpu.memory_space<vmem>>, vector<32x32xf32>
    %c32 = arith.constant 32 : index
    %c0_1 = arith.constant 0 : index
    %1 = vector.load %arg2[%c32, %c0_1] : memref<160x128xf32, #tpu.memory_space<vmem>>, vector<32x32xf32>
    %c64 = arith.constant 64 : index
    %c0_2 = arith.constant 0 : index
    %2 = vector.load %arg2[%c64, %c0_2] : memref<160x128xf32, #tpu.memory_space<vmem>>, vector<32x32xf32>
    %c96 = arith.constant 96 : index
    %c0_3 = arith.constant 0 : index
    %3 = vector.load %arg2[%c96, %c0_3] : memref<160x128xf32, #tpu.memory_space<vmem>>, vector<32x32xf32>
    %c128 = arith.constant 128 : index
    %c0_4 = arith.constant 0 : index
    %4 = vector.load %arg2[%c128, %c0_4] : memref<160x128xf32, #tpu.memory_space<vmem>>, vector<32x16xf32>
    %c0_5 = arith.constant 0 : index
    %c0_6 = arith.constant 0 : index
    %5 = vector.load %arg3[%c0_5, %c0_6] : memref<8x128xf32, #tpu.memory_space<vmem>>, vector<1x32xf32>
    %c1 = arith.constant 1 : index
    %c0_7 = arith.constant 0 : index
    %6 = vector.load %arg3[%c1, %c0_7] : memref<8x128xf32, #tpu.memory_space<vmem>>, vector<1x32xf32>
    %c2 = arith.constant 2 : index
    %c0_8 = arith.constant 0 : index
    %7 = vector.load %arg3[%c2, %c0_8] : memref<8x128xf32, #tpu.memory_space<vmem>>, vector<1x32xf32>
    %c3 = arith.constant 3 : index
    %c0_9 = arith.constant 0 : index
    %8 = vector.load %arg3[%c3, %c0_9] : memref<8x128xf32, #tpu.memory_space<vmem>>, vector<1x16xf32>
    %c5 = arith.constant 5 : index
    %c0_10 = arith.constant 0 : index
    %9 = vector.load %arg3[%c5, %c0_10] : memref<8x128xf32, #tpu.memory_space<vmem>>, vector<1x32xf32>
    %c0_11 = arith.constant 0 : index
    %c0_12 = arith.constant 0 : index
    %c0_13 = arith.constant 0 : index
    %10 = vector.load %arg0[%c0_11, %c0_12, %c0_13] : memref<2x8x32xf32, #tpu.memory_space<vmem>>, vector<2x8x32xf32>
    %cst = arith.constant dense<0.000000e+00> : vector<2x32xf32>
    %11 = vector.multi_reduction <add>, %10, %cst [1] : vector<2x8x32xf32> to vector<2x32xf32>
    %cst_14 = arith.constant 8.000000e+00 : f32
    %12 = vector.broadcast %cst_14 : f32 to vector<2x32xf32>
    %13 = arith.divf %11, %12 : vector<2x32xf32>
    %cst_15 = arith.constant dense<0.000000e+00> : vector<2x32xf32>
    %14 = tpu.matmul %13, %0, %cst_15 {dimension_numbers = #tpu.dot_dimension_numbers<[1], [0], [0], [1], [0, 0, 1, 1], [], []>} : vector<2x32xf32>, vector<32x32xf32>, vector<2x32xf32> -> vector<2x32xf32>
    %15 = vector.broadcast %5 : vector<1x32xf32> to vector<2x32xf32>
    %16 = arith.addf %14, %15 : vector<2x32xf32>
    %17 = math.tanh %16 : vector<2x32xf32>
    %c0_16 = arith.constant 0 : index
    %c0_17 = arith.constant 0 : index
    %c0_18 = arith.constant 0 : index
    %18 = vector.load %arg1[%c0_16, %c0_17, %c0_18] : memref<2x16x32xf32, #tpu.memory_space<vmem>>, vector<2x16x32xf32>
    %19 = vector.shape_cast %18 : vector<2x16x32xf32> to vector<32x32xf32>
    %cst_19 = arith.constant dense<0.000000e+00> : vector<32x32xf32>
    %20 = tpu.matmul %19, %1, %cst_19 {dimension_numbers = #tpu.dot_dimension_numbers<[1], [0], [0], [1], [0, 0, 1, 1], [], []>} : vector<32x32xf32>, vector<32x32xf32>, vector<32x32xf32> -> vector<32x32xf32>
    %21 = vector.broadcast %6 : vector<1x32xf32> to vector<32x32xf32>
    %22 = arith.addf %20, %21 : vector<32x32xf32>
    %23 = math.tanh %22 : vector<32x32xf32>
    %cst_20 = arith.constant dense<0.000000e+00> : vector<32x32xf32>
    %24 = tpu.matmul %23, %2, %cst_20 {dimension_numbers = #tpu.dot_dimension_numbers<[1], [0], [0], [1], [0, 0, 1, 1], [], []>} : vector<32x32xf32>, vector<32x32xf32>, vector<32x32xf32> -> vector<32x32xf32>
    %25 = vector.shape_cast %24 : vector<32x32xf32> to vector<2x16x32xf32>
    %cst_21 = arith.constant dense<0.000000e+00> : vector<2x32xf32>
    %26 = tpu.matmul %17, %3, %cst_21 {dimension_numbers = #tpu.dot_dimension_numbers<[1], [0], [0], [1], [0, 0, 1, 1], [], []>} : vector<2x32xf32>, vector<32x32xf32>, vector<2x32xf32> -> vector<2x32xf32>
    %27 = vector.shape_cast %26 : vector<2x32xf32> to vector<2x1x32xf32>
    %28 = vector.broadcast %27 : vector<2x1x32xf32> to vector<2x16x32xf32>
    %29 = arith.addf %25, %28 : vector<2x16x32xf32>
    %30 = vector.shape_cast %7 : vector<1x32xf32> to vector<1x1x32xf32>
    %31 = vector.broadcast %30 : vector<1x1x32xf32> to vector<2x16x32xf32>
    %32 = arith.addf %29, %31 : vector<2x16x32xf32>
    %33 = math.tanh %32 : vector<2x16x32xf32>
    %34 = vector.shape_cast %9 : vector<1x32xf32> to vector<1x1x32xf32>
    %35 = vector.broadcast %34 : vector<1x1x32xf32> to vector<2x16x32xf32>
    %36 = arith.mulf %33, %35 : vector<2x16x32xf32>
    %cst_22 = arith.constant dense<0.000000e+00> : vector<2x16xf32>
    %37 = vector.multi_reduction <add>, %36, %cst_22 [2] : vector<2x16x32xf32> to vector<2x16xf32>
    %cst_23 = arith.constant dense<0xFF800000> : vector<2xf32>
    %38 = vector.multi_reduction <maximumf>, %37, %cst_23 [1] : vector<2x16xf32> to vector<2xf32>
    %39 = vector.shape_cast %38 : vector<2xf32> to vector<2x1xf32>
    %40 = vector.broadcast %39 : vector<2x1xf32> to vector<2x16xf32>
    %41 = arith.subf %37, %40 : vector<2x16xf32>
    %42 = math.exp %41 : vector<2x16xf32>
    %cst_24 = arith.constant dense<0.000000e+00> : vector<2xf32>
    %43 = vector.multi_reduction <add>, %42, %cst_24 [1] : vector<2x16xf32> to vector<2xf32>
    %44 = vector.shape_cast %43 : vector<2xf32> to vector<2x1xf32>
    %45 = vector.broadcast %44 : vector<2x1xf32> to vector<2x16xf32>
    %46 = arith.divf %42, %45 : vector<2x16xf32>
    %cst_25 = arith.constant dense<0.000000e+00> : vector<2x16xf32>
    %47 = vector.multi_reduction <add>, %36, %cst_25 [2] : vector<2x16x32xf32> to vector<2x16xf32>
    %48 = vector.shape_cast %47 : vector<2x16xf32> to vector<2x16x1xf32>
    %cst_26 = arith.constant dense<0xFF800000> : vector<2x1xf32>
    %49 = vector.multi_reduction <maximumf>, %48, %cst_26 [1] : vector<2x16x1xf32> to vector<2x1xf32>
    %50 = vector.shape_cast %49 : vector<2x1xf32> to vector<2x1x1xf32>
    %51 = vector.broadcast %50 : vector<2x1x1xf32> to vector<2x16x1xf32>
    %52 = arith.subf %48, %51 : vector<2x16x1xf32>
    %53 = math.exp %52 : vector<2x16x1xf32>
    %cst_27 = arith.constant dense<0.000000e+00> : vector<2x1xf32>
    %54 = vector.multi_reduction <add>, %53, %cst_27 [1] : vector<2x16x1xf32> to vector<2x1xf32>
    %55 = vector.shape_cast %54 : vector<2x1xf32> to vector<2x1x1xf32>
    %56 = vector.broadcast %55 : vector<2x1x1xf32> to vector<2x16x1xf32>
    %57 = arith.divf %53, %56 : vector<2x16x1xf32>
    %58 = vector.shape_cast %23 : vector<32x32xf32> to vector<2x16x32xf32>
    %59 = vector.broadcast %57 : vector<2x16x1xf32> to vector<2x16x32xf32>
    %60 = arith.mulf %59, %58 : vector<2x16x32xf32>
    %cst_28 = arith.constant dense<0.000000e+00> : vector<2x32xf32>
    %61 = vector.multi_reduction <add>, %60, %cst_28 [1] : vector<2x16x32xf32> to vector<2x32xf32>
    %62 = arith.addf %17, %61 : vector<2x32xf32>
    %cst_29 = arith.constant dense<0.000000e+00> : vector<2x16xf32>
    %63 = tpu.matmul %62, %4, %cst_29 {dimension_numbers = #tpu.dot_dimension_numbers<[1], [0], [0], [1], [0, 0, 1, 1], [], []>} : vector<2x32xf32>, vector<32x16xf32>, vector<2x16xf32> -> vector<2x16xf32>
    %64 = vector.broadcast %8 : vector<1x16xf32> to vector<2x16xf32>
    %65 = arith.addf %63, %64 : vector<2x16xf32>
    %cst_30 = arith.constant 0.000000e+00 : f32
    %66 = vector.broadcast %cst_30 : f32 to vector<2x96xf32>
    %67 = tpu.concatenate %65, %46, %66 in 1 : vector<2x16xf32>, vector<2x16xf32>, vector<2x96xf32> -> vector<2x128xf32>
    %cst_31 = arith.constant 0.000000e+00 : f32
    %68 = vector.broadcast %cst_31 : f32 to vector<6x128xf32>
    %69 = tpu.concatenate %67, %68 in 0 : vector<2x128xf32>, vector<6x128xf32> -> vector<8x128xf32>
    %c0_32 = arith.constant 0 : index
    %c0_33 = arith.constant 0 : index
    %70 = vector.load %arg4[%c0_32, %c0_33] : memref<8x128xf32, #tpu.memory_space<vmem>>, vector<8x128xf32>
    tpu.vector_store %arg4[%c0_32, %c0_33], %69 {strides = array<i32>} : memref<8x128xf32, #tpu.memory_space<vmem>>, vector<8x128xf32>,
    return
  }
}

</mosaic_0001>

<llo_original>
// kernel: san_baseline_forward.1
$region0: #{san_baseline_forward.1}
  #allocation0 [shape = 'u32[]', space=smem, size = 0x4, offset = 0x4, fixed_abs, tag = 'smem constant byte address 0x4 - core index']
  #allocation1 [shape = 'u32[144,128]{1,0:T(1,128)}', space=vmem, size = 0x12000, scoped, tag = 'internal scratch']
  %s0 = inlined_call_operand.hbm [shape: f32[2,8,32], index: 0, kind: input, shape index: {}]
  %s1 = inlined_call_operand.hbm [shape: f32[2,16,32], index: 1, kind: input, shape index: {}]
  %s2 = inlined_call_operand.hbm [shape: f32[160,128], index: 2, kind: input, shape index: {}]
  %s3 = inlined_call_operand.hbm [shape: f32[8,128], index: 3, kind: input, shape index: {}]
  %s4 = inlined_call_operand.vmem [shape: f32[8,128], index: 4, kind: output, shape index: {}]
  %s5 = sld [smem:[#allocation0]]
  $region42: #{san_baseline_forward.1} parent=0
    _
  %s7 = ssub.s32 1, %s5
  %s8 = scalar_select 0, %s7, %s5
  $region1: #{san_baseline_forward.1} parent=0
    #allocation2 [shape = 'u8[8192]{0}', space=vmem, size = 0x2000, scoped, tag = 'input window, operand 0, single buffered']
    #allocation3 [shape = 's32[1]{0}', space=sflag, size = 0x4, scoped, tag = 'scoped memory for san_baseline_forward.1']
    #allocation4 [shape = 'u8[16384]{0}', space=vmem, size = 0x4000, scoped, tag = 'input window, operand 1, single buffered']
    #allocation5 [shape = 's32[1]{0}', space=sflag, size = 0x4, scoped, tag = 'scoped memory for san_baseline_forward.1']
    #allocation6 [shape = 'u8[81920]{0}', space=vmem, size = 0x14000, scoped, tag = 'input window, operand 2, single buffered']
    #allocation7 [shape = 'u8[4096]{0}', space=vmem, size = 0x1000, scoped, tag = 'input window, operand 3, single buffered']
    #allocation8 [shape = 's32[1]{0}', space=sflag, size = 0x4, scoped, tag = 'scoped memory for san_baseline_forward.1']
    %9 = vsyncpa [#allocation3], 0
    %10 = vsyncpa [#allocation5], 0
    %11 = vsyncpa [#allocation8], 0
    // Predicated region
    $region2: #{san_baseline_forward.1} parent=1 // pred_check
      _
    $region3: #{san_baseline_forward.1} parent=1 // pred_check_branch
      %13 = sbr.rel (0) target = $region5
    $region4: #{san_baseline_forward.1} parent=1 // pred_region
      %s15 = ssub.s32 256, 256
      %16 = vsyncadd [#allocation3], %s15
      %s17 = sshll.u32 [#allocation2], 4
      %s18 = int_to_ptr.vmem [resolvable:$true] %s17
      %23 = dma.hbm_to_vmem [thread:$0]  %s0, 256, %s18, [#allocation3], 128, 128, 8
    $region5: #{san_baseline_forward.1} parent=1 // pred_fallthru
      _
    // Predicated region
    $region6: #{san_baseline_forward.1} parent=1 // pred_check
      _
    $region7: #{san_baseline_forward.1} parent=1 // pred_check_branch
      %25 = sbr.rel (0) target = $region9
    $region8: #{san_baseline_forward.1} parent=1 // pred_region
      %s27 = ssub.s32 512, 512
      %28 = vsyncadd [#allocation5], %s27
      %s29 = sshll.u32 [#allocation4], 4
      %s30 = int_to_ptr.vmem [resolvable:$true] %s29
      %35 = dma.hbm_to_vmem [thread:$0]  %s1, 512, %s30, [#allocation5], 128, 128, 8
    $region9: #{san_baseline_forward.1} parent=1 // pred_fallthru
      _
    // Predicated region
    $region10: #{san_baseline_forward.1} parent=1 // pred_check
      _
    $region11: #{san_baseline_forward.1} parent=1 // pred_check_branch
      %37 = sbr.rel (0) target = $region13
    $region12: #{san_baseline_forward.1} parent=1 // pred_region
      %s39 = ssub.s32 2560, 2560
      %40 = vsyncadd [#allocation5], %s39
      %s41 = sshll.u32 [#allocation6], 4
      %s42 = int_to_ptr.vmem [resolvable:$true] %s41
      %47 = dma.hbm_to_vmem [thread:$0]  %s2, 2560, %s42, [#allocation5], 128, 128, 8
    $region13: #{san_baseline_forward.1} parent=1 // pred_fallthru
      _
    // Predicated region
    $region14: #{san_baseline_forward.1} parent=1 // pred_check
      _
    $region15: #{san_baseline_forward.1} parent=1 // pred_check_branch
      %49 = sbr.rel (0) target = $region17
    $region16: #{san_baseline_forward.1} parent=1 // pred_region
      %s51 = ssub.s32 128, 128
      %52 = vsyncadd [#allocation8], %s51
      %s54 = sshll.u32 [#allocation7], 4
      %s55 = int_to_ptr.vmem [resolvable:$true] %s54
      %57 = dma.hbm_to_vmem [thread:$0]  %s3, 128, %s55, [#allocation8]
    $region17: #{san_baseline_forward.1} parent=1 // pred_fallthru
      _
    // Predicated region
    $region18: #{san_baseline_forward.1} parent=1 // pred_check
      _
    $region19: #{san_baseline_forward.1} parent=1 // pred_check_branch
      %59 = sbr.rel (0) target = $region21
    $region20: #{san_baseline_forward.1} parent=1 // pred_region
      %60 = dma.done [#allocation3], 256
    $region21: #{san_baseline_forward.1} parent=1 // pred_fallthru
      _
    // Predicated region
    $region22: #{san_baseline_forward.1} parent=1 // pred_check
      _
    $region23: #{san_baseline_forward.1} parent=1 // pred_check_branch
      %62 = sbr.rel (0) target = $region25
    $region24: #{san_baseline_forward.1} parent=1 // pred_region
      %63 = dma.done [#allocation5], 512
    $region25: #{san_baseline_forward.1} parent=1 // pred_fallthru
      _
    // Predicated region
    $region26: #{san_baseline_forward.1} parent=1 // pred_check
      _
    $region27: #{san_baseline_forward.1} parent=1 // pred_check_branch
      %65 = sbr.rel (0) target = $region29
    $region28: #{san_baseline_forward.1} parent=1 // pred_region
      %66 = dma.done [#allocation5], 2560
    $region29: #{san_baseline_forward.1} parent=1 // pred_fallthru
      _
    // Predicated region
    $region30: #{san_baseline_forward.1} parent=1 // pred_check
      _
    $region31: #{san_baseline_forward.1} parent=1 // pred_check_branch
      %68 = sbr.rel (0) target = $region33
    $region32: #{san_baseline_forward.1} parent=1 // pred_region
      %69 = dma.done [#allocation8], 128
    $region33: #{san_baseline_forward.1} parent=1 // pred_fallthru
      _
    %v70 = vld [vmem:[#allocation6] sm:$0xff]
    %v71 = vld [vmem:[#allocation6 + $0x8] sm:$0xff]
    %v72 = vld [vmem:[#allocation6 + $0x10] sm:$0xff]
    %v73 = vld [vmem:[#allocation6 + $0x18] sm:$0xff]
    %v74 = vld [vmem:[#allocation6 + $0x20] sm:$0xff]
    %v75 = vld [vmem:[#allocation6 + $0x28] sm:$0xff]
    %v76 = vld [vmem:[#allocation6 + $0x30] sm:$0xff]
    %v77 = vld [vmem:[#allocation6 + $0x38] sm:$0xff]
    %v78 = vld [vmem:[#allocation6 + $0x40] sm:$0xff]
    %v79 = vld [vmem:[#allocation6 + $0x48] sm:$0xff]
    %v80 = vld [vmem:[#allocation6 + $0x50] sm:$0xff]
    %v81 = vld [vmem:[#allocation6 + $0x58] sm:$0xff]
    %v82 = vld [vmem:[#allocation6 + $0x60] sm:$0xff]
    %v83 = vld [vmem:[#allocation6 + $0x68] sm:$0xff]
    %v84 = vld [vmem:[#allocation6 + $0x70] sm:$0xff]
    %v85 = vld [vmem:[#allocation6 + $0x78] sm:$0xff]
    %v86 = vld [vmem:[#allocation6 + $0x80] sm:$0xff]
    %v87 = vld [vmem:[#allocation6 + $0x88] sm:$0xff]
    %v88 = vld [vmem:[#allocation6 + $0x90] sm:$0xff]
    %v89 = vld [vmem:[#allocation6 + $0x98] sm:$0xff]
    %v90 = vld [vmem:[#allocation7] sm:$0x1]
    %v91 = vld [vmem:[#allocation7 + $0x1] sm:$0x1]
    %v92 = vld [vmem:[#allocation7 + $0x2] sm:$0x1]
    %v93 = vld [vmem:[#allocation7 + $0x3] sm:$0x1]
    %v94 = vld [vmem:[#allocation7 + $0x5] sm:$0x1]
    %v95 = vld [vmem:[#allocation2] sm:$0xff]
    %v96 = vld [vmem:[#allocation2 + $0x8] sm:$0xff]
    %vm97 = vcmask 261120
    %v98 = vsel %vm97, %v95, 0.0
    %v99 = vrot.slane %v98, 4
    %v100 = vadd.f32 %v98, %v99
    %v101 = vrot.slane %v100, 2
    %v102 = vadd.f32 %v100, %v101
    %v103 = vrot.slane %v102, 1
    %v104 = vadd.f32 %v102, %v103
    %v105 = vsel %vm97, %v96, 0.0
    %v106 = vrot.slane %v105, 4
    %v107 = vadd.f32 %v105, %v106
    %v108 = vrot.slane %v107, 2
    %v109 = vadd.f32 %v107, %v108
    %v110 = vrot.slane %v109, 1
    %v111 = vadd.f32 %v109, %v110
    %v112 = vrcp.pop 8.0
    %v113 = vmul.f32 %v104, %v112
    %v114 = vmul.f32 %v111, %v112
    %v115 = vlaneseq
    %v116 = vshrl.u32 %v115, 7
    %v117 = vsub.s32 0, %v116
    %v118 = vrot.slane %v90, %v117
    %vm121 = vcmask 1041409
    %v122 = vsel %vm121, %v114, %v113
    %v123 = vsel %vm97, %v122, 0
    %125 = vmatprep.subr.mxu0 0.0
    %126 = vmatpush1.msra.mxu0 0.0
    %127 = vmatprep.subr.mxu0 0.0
    %128 = vmatpush1.msra.mxu0 0.0
    %129 = vmatprep.subr.mxu0 0.0
    %130 = vmatpush1.msra.mxu0 0.0
    %131 = vmatprep.subr.mxu0 0.0
    %132 = vmatpush1.msra.mxu0 0.0
    %133 = vmatprep.subr.mxu0 0.0
    %134 = vmatpush1.msra.mxu0 0.0
    %135 = vmatprep.subr.mxu0 0.0
    %136 = vmatpush1.msra.mxu0 0.0
    %137 = vmatprep.subr.mxu0 0.0
    %138 = vmatpush1.msra.mxu0 0.0
    %139 = vmatprep.subr.mxu0 0.0
    %140 = vmatpush1.msra.mxu0 0.0
    %141 = vmatprep.subr.mxu0 0.0
    %142 = vmatpush1.msra.mxu0 0.0
    %143 = vmatprep.subr.mxu0 0.0
    %144 = vmatpush1.msra.mxu0 0.0
    %145 = vmatprep.subr.mxu0 0.0
    %146 = vmatpush1.msra.mxu0 0.0
    %147 = vmatprep.subr.mxu0 0.0
    %148 = vmatpush1.msra.mxu0 0.0
    %149 = vmatprep.subr.mxu0 0.0
    %150 = vmatpush1.msra.mxu0 %v73
    %151 = vmatprep.subr.mxu0 0.0
    %152 = vmatpush1.msra.mxu0 %v72
    %153 = vmatprep.subr.mxu0 0.0
    %154 = vmatpush1.msra.mxu0 %v71
    %155 = vmatprep.subr.mxu0 0.0
    %156 = vmatpush1.msra.mxu0 %v70
    %157 = vmatprep.subr.mxu0 0.0
    %158 = vmatpush2.msra.mxu0 0.0
    %159 = vmatprep.subr.mxu0 0.0
    %160 = vmatpush2.msra.mxu0 0.0
    %161 = vmatprep.subr.mxu0 0.0
    %162 = vmatpush2.msra.mxu0 0.0
    %163 = vmatprep.subr.mxu0 0.0
    %164 = vmatpush2.msra.mxu0 0.0
    %165 = vmatprep.subr.mxu0 0.0
    %166 = vmatpush2.msra.mxu0 0.0
    %167 = vmatprep.subr.mxu0 0.0
    %168 = vmatpush2.msra.mxu0 0.0
    %169 = vmatprep.subr.mxu0 0.0
    %170 = vmatpush2.msra.mxu0 0.0
    %171 = vmatprep.subr.mxu0 0.0
    %172 = vmatpush2.msra.mxu0 0.0
    %173 = vmatprep.subr.mxu0 0.0
    %174 = vmatpush2.msra.mxu0 0.0
    %175 = vmatprep.subr.mxu0 0.0
    %176 = vmatpush2.msra.mxu0 0.0
    %177 = vmatprep.subr.mxu0 0.0
    %178 = vmatpush2.msra.mxu0 0.0
    %179 = vmatprep.subr.mxu0 0.0
    %180 = vmatpush2.msra.mxu0 0.0
    %181 = vmatprep.subr.mxu0 0.0
    %182 = vmatpush2.msra.mxu0 0.0
    %183 = vmatprep.subr.mxu0 0.0
    %184 = vmatpush2.msra.mxu0 0.0
    %185 = vmatprep.subr.mxu0 0.0
    %186 = vmatpush2.msra.mxu0 0.0
    %187 = vmatprep.subr.mxu0 0.0
    %188 = vmatpush2.msra.mxu0 0.0
    %189 = vmatprep.mubr.f32.mxu0 0.0
    %190 = vmatmul.mubr.f32.gmra.mxu0 %v123
    %v191 = vpop.f32.mrf.mxu0
    %v192 = vadd.f32 %v118, %v191
    %v193 = vpop.f32.mrf.mxu0
    %194 = vdwg.mxu0
    %v195 = vtanh.pop %v192
    %v196 = vld [vmem:[#allocation4] sm:$0xff]
    %v197 = vld [vmem:[#allocation4 + $0x8] sm:$0xff]
    %v198 = vld [vmem:[#allocation4 + $0x10] sm:$0xff]
    %v199 = vld [vmem:[#allocation4 + $0x18] sm:$0xff]
    %v200 = vlaneseq
    %v201 = vshrl.u32 %v200, 7
    %v202 = vsub.s32 0, %v201
    %v203 = vrot.slane %v91, %v202
    %v205 = vsel %vm97, %v196, 0
    %v208 = vsel %vm97, %v197, 0
    %v211 = vsel %vm97, %v198, 0
    %v214 = vsel %vm97, %v199, 0
    %216 = vmatprep.subr.mxu0 0.0
    %217 = vmatpush1.msra.mxu0 0.0
    %218 = vmatprep.subr.mxu0 0.0
    %219 = vmatpush1.msra.mxu0 0.0
    %220 = vmatprep.subr.mxu0 0.0
    %221 = vmatpush1.msra.mxu0 0.0
    %222 = vmatprep.subr.mxu0 0.0
    %223 = vmatpush1.msra.mxu0 0.0
    %224 = vmatprep.subr.mxu0 0.0
    %225 = vmatpush1.msra.mxu0 0.0
    %226 = vmatprep.subr.mxu0 0.0
    %227 = vmatpush1.msra.mxu0 0.0
    %228 = vmatprep.subr.mxu0 0.0
    %229 = vmatpush1.msra.mxu0 0.0
    %230 = vmatprep.subr.mxu0 0.0
    %231 = vmatpush1.msra.mxu0 0.0
    %232 = vmatprep.subr.mxu0 0.0
    %233 = vmatpush1.msra.mxu0 0.0
    %234 = vmatprep.subr.mxu0 0.0
    %235 = vmatpush1.msra.mxu0 0.0
    %236 = vmatprep.subr.mxu0 0.0
    %237 = vmatpush1.msra.mxu0 0.0
    %238 = vmatprep.subr.mxu0 0.0
    %239 = vmatpush1.msra.mxu0 0.0
    %240 = vmatprep.subr.mxu0 0.0
    %241 = vmatpush1.msra.mxu0 %v77
    %242 = vmatprep.subr.mxu0 0.0
    %243 = vmatpush1.msra.mxu0 %v76
    %244 = vmatprep.subr.mxu0 0.0
    %245 = vmatpush1.msra.mxu0 %v75
    %246 = vmatprep.subr.mxu0 0.0
    %247 = vmatpush1.msra.mxu0 %v74
    %248 = vmatprep.subr.mxu0 0.0
    %249 = vmatpush2.msra.mxu0 0.0
    %250 = vmatprep.subr.mxu0 0.0
    %251 = vmatpush2.msra.mxu0 0.0
    %252 = vmatprep.subr.mxu0 0.0
    %253 = vmatpush2.msra.mxu0 0.0
    %254 = vmatprep.subr.mxu0 0.0
    %255 = vmatpush2.msra.mxu0 0.0
    %256 = vmatprep.subr.mxu0 0.0
    %257 = vmatpush2.msra.mxu0 0.0
    %258 = vmatprep.subr.mxu0 0.0
    %259 = vmatpush2.msra.mxu0 0.0
    %260 = vmatprep.subr.mxu0 0.0
    %261 = vmatpush2.msra.mxu0 0.0
    %262 = vmatprep.subr.mxu0 0.0
    %263 = vmatpush2.msra.mxu0 0.0
    %264 = vmatprep.subr.mxu0 0.0
    %265 = vmatpush2.msra.mxu0 0.0
    %266 = vmatprep.subr.mxu0 0.0
    %267 = vmatpush2.msra.mxu0 0.0
    %268 = vmatprep.subr.mxu0 0.0
    %269 = vmatpush2.msra.mxu0 0.0
    %270 = vmatprep.subr.mxu0 0.0
    %271 = vmatpush2.msra.mxu0 0.0
    %272 = vmatprep.subr.mxu0 0.0
    %273 = vmatpush2.msra.mxu0 0.0
    %274 = vmatprep.subr.mxu0 0.0
    %275 = vmatpush2.msra.mxu0 0.0
    %276 = vmatprep.subr.mxu0 0.0
    %277 = vmatpush2.msra.mxu0 0.0
    %278 = vmatprep.subr.mxu0 0.0
    %279 = vmatpush2.msra.mxu0 0.0
    %280 = vmatprep.mubr.f32.mxu0 0.0
    %281 = vmatmul.mubr.f32.gmra.mxu0 %v205
    %v282 = vpop.f32.mrf.mxu0
    %v283 = vadd.f32 %v203, %v282
    %v284 = vpop.f32.mrf.mxu0
    %285 = vmatprep.mubr.f32.mxu0 0.0
    %286 = vmatmul.mubr.f32.gmra.mxu0 %v208
    %v287 = vpop.f32.mrf.mxu0
    %v288 = vadd.f32 %v203, %v287
    %v289 = vpop.f32.mrf.mxu0
    %290 = vmatprep.mubr.f32.mxu0 0.0
    %291 = vmatmul.mubr.f32.gmra.mxu0 %v211
    %v292 = vpop.f32.mrf.mxu0
    %v293 = vadd.f32 %v203, %v292
    %v294 = vpop.f32.mrf.mxu0
    %295 = vmatprep.mubr.f32.mxu0 0.0
    %296 = vmatmul.mubr.f32.gmra.mxu0 %v214
    %v297 = vpop.f32.mrf.mxu0
    %v298 = vadd.f32 %v203, %v297
    %v299 = vpop.f32.mrf.mxu0
    %300 = vdwg.mxu0
    %v301 = vtanh.pop %v283
    %v302 = vtanh.pop %v288
    %v303 = vtanh.pop %v293
    %v304 = vtanh.pop %v298
    %v306 = vsel %vm97, %v301, 0
    %v309 = vsel %vm97, %v302, 0
    %v312 = vsel %vm97, %v303, 0
    %v315 = vsel %vm97, %v304, 0
    %317 = vmatprep.subr.mxu0 0.0
    %318 = vmatpush1.msra.mxu0 0.0
    %319 = vmatprep.subr.mxu0 0.0
    %320 = vmatpush1.msra.mxu0 0.0
    %321 = vmatprep.subr.mxu0 0.0
    %322 = vmatpush1.msra.mxu0 0.0
    %323 = vmatprep.subr.mxu0 0.0
    %324 = vmatpush1.msra.mxu0 0.0
    %325 = vmatprep.subr.mxu0 0.0
    %326 = vmatpush1.msra.mxu0 0.0
    %327 = vmatprep.subr.mxu0 0.0
    %328 = vmatpush1.msra.mxu0 0.0
    %329 = vmatprep.subr.mxu0 0.0
    %330 = vmatpush1.msra.mxu0 0.0
    %331 = vmatprep.subr.mxu0 0.0
    %332 = vmatpush1.msra.mxu0 0.0
    %333 = vmatprep.subr.mxu0 0.0
    %334 = vmatpush1.msra.mxu0 0.0
    %335 = vmatprep.subr.mxu0 0.0
    %336 = vmatpush1.msra.mxu0 0.0
    %337 = vmatprep.subr.mxu0 0.0
    %338 = vmatpush1.msra.mxu0 0.0
    %339 = vmatprep.subr.mxu0 0.0
    %340 = vmatpush1.msra.mxu0 0.0
    %341 = vmatprep.subr.mxu0 0.0
    %342 = vmatpush1.msra.mxu0 %v81
    %343 = vmatprep.subr.mxu0 0.0
    %344 = vmatpush1.msra.mxu0 %v80
    %345 = vmatprep.subr.mxu0 0.0
    %346 = vmatpush1.msra.mxu0 %v79
    %347 = vmatprep.subr.mxu0 0.0
    %348 = vmatpush1.msra.mxu0 %v78
    %349 = vmatprep.subr.mxu0 0.0
    %350 = vmatpush2.msra.mxu0 0.0
    %351 = vmatprep.subr.mxu0 0.0
    %352 = vmatpush2.msra.mxu0 0.0
    %353 = vmatprep.subr.mxu0 0.0
    %354 = vmatpush2.msra.mxu0 0.0
    %355 = vmatprep.subr.mxu0 0.0
    %356 = vmatpush2.msra.mxu0 0.0
    %357 = vmatprep.subr.mxu0 0.0
    %358 = vmatpush2.msra.mxu0 0.0
    %359 = vmatprep.subr.mxu0 0.0
    %360 = vmatpush2.msra.mxu0 0.0
    %361 = vmatprep.subr.mxu0 0.0
    %362 = vmatpush2.msra.mxu0 0.0
    %363 = vmatprep.subr.mxu0 0.0
    %364 = vmatpush2.msra.mxu0 0.0
    %365 = vmatprep.subr.mxu0 0.0
    %366 = vmatpush2.msra.mxu0 0.0
    %367 = vmatprep.subr.mxu0 0.0
    %368 = vmatpush2.msra.mxu0 0.0
    %369 = vmatprep.subr.mxu0 0.0
    %370 = vmatpush2.msra.mxu0 0.0
    %371 = vmatprep.subr.mxu0 0.0
    %372 = vmatpush2.msra.mxu0 0.0
    %373 = vmatprep.subr.mxu0 0.0
    %374 = vmatpush2.msra.mxu0 0.0
    %375 = vmatprep.subr.mxu0 0.0
    %376 = vmatpush2.msra.mxu0 0.0
    %377 = vmatprep.subr.mxu0 0.0
    %378 = vmatpush2.msra.mxu0 0.0
    %379 = vmatprep.subr.mxu0 0.0
    %380 = vmatpush2.msra.mxu0 0.0
    %381 = vmatprep.mubr.f32.mxu0 0.0
    %382 = vmatmul.mubr.f32.gmra.mxu0 %v306
    %v383 = vpop.f32.mrf.mxu0
    %v384 = vadd.f32 0.0, %v383
    %v385 = vpop.f32.mrf.mxu0
    %386 = vmatprep.mubr.f32.mxu0 0.0
    %387 = vmatmul.mubr.f32.gmra.mxu0 %v309
    %v388 = vpop.f32.mrf.mxu0
    %v389 = vadd.f32 0.0, %v388
    %v390 = vpop.f32.mrf.mxu0
    %391 = vmatprep.mubr.f32.mxu0 0.0
    %392 = vmatmul.mubr.f32.gmra.mxu0 %v312
    %v393 = vpop.f32.mrf.mxu0
    %v394 = vadd.f32 0.0, %v393
    %v395 = vpop.f32.mrf.mxu0
    %396 = vmatprep.mubr.f32.mxu0 0.0
    %397 = vmatmul.mubr.f32.gmra.mxu0 %v315
    %v398 = vpop.f32.mrf.mxu0
    %v399 = vadd.f32 0.0, %v398
    %v400 = vpop.f32.mrf.mxu0
    %401 = vdwg.mxu0
    %v403 = vsel %vm97, %v195, 0
    %405 = vmatprep.subr.mxu0 0.0
    %406 = vmatpush1.msra.mxu0 0.0
    %407 = vmatprep.subr.mxu0 0.0
    %408 = vmatpush1.msra.mxu0 0.0
    %409 = vmatprep.subr.mxu0 0.0
    %410 = vmatpush1.msra.mxu0 0.0
    %411 = vmatprep.subr.mxu0 0.0
    %412 = vmatpush1.msra.mxu0 0.0
    %413 = vmatprep.subr.mxu0 0.0
    %414 = vmatpush1.msra.mxu0 0.0
    %415 = vmatprep.subr.mxu0 0.0
    %416 = vmatpush1.msra.mxu0 0.0
    %417 = vmatprep.subr.mxu0 0.0
    %418 = vmatpush1.msra.mxu0 0.0
    %419 = vmatprep.subr.mxu0 0.0
    %420 = vmatpush1.msra.mxu0 0.0
    %421 = vmatprep.subr.mxu0 0.0
    %422 = vmatpush1.msra.mxu0 0.0
    %423 = vmatprep.subr.mxu0 0.0
    %424 = vmatpush1.msra.mxu0 0.0
    %425 = vmatprep.subr.mxu0 0.0
    %426 = vmatpush1.msra.mxu0 0.0
    %427 = vmatprep.subr.mxu0 0.0
    %428 = vmatpush1.msra.mxu0 0.0
    %429 = vmatprep.subr.mxu0 0.0
    %430 = vmatpush1.msra.mxu0 %v85
    %431 = vmatprep.subr.mxu0 0.0
    %432 = vmatpush1.msra.mxu0 %v84
    %433 = vmatprep.subr.mxu0 0.0
    %434 = vmatpush1.msra.mxu0 %v83
    %435 = vmatprep.subr.mxu0 0.0
    %436 = vmatpush1.msra.mxu0 %v82
    %437 = vmatprep.subr.mxu0 0.0
    %438 = vmatpush2.msra.mxu0 0.0
    %439 = vmatprep.subr.mxu0 0.0
    %440 = vmatpush2.msra.mxu0 0.0
    %441 = vmatprep.subr.mxu0 0.0
    %442 = vmatpush2.msra.mxu0 0.0
    %443 = vmatprep.subr.mxu0 0.0
    %444 = vmatpush2.msra.mxu0 0.0
    %445 = vmatprep.subr.mxu0 0.0
    %446 = vmatpush2.msra.mxu0 0.0
    %447 = vmatprep.subr.mxu0 0.0
    %448 = vmatpush2.msra.mxu0 0.0
    %449 = vmatprep.subr.mxu0 0.0
    %450 = vmatpush2.msra.mxu0 0.0
    %451 = vmatprep.subr.mxu0 0.0
    %452 = vmatpush2.msra.mxu0 0.0
    %453 = vmatprep.subr.mxu0 0.0
    %454 = vmatpush2.msra.mxu0 0.0
    %455 = vmatprep.subr.mxu0 0.0
    %456 = vmatpush2.msra.mxu0 0.0
    %457 = vmatprep.subr.mxu0 0.0
    %458 = vmatpush2.msra.mxu0 0.0
    %459 = vmatprep.subr.mxu0 0.0
    %460 = vmatpush2.msra.mxu0 0.0
    %461 = vmatprep.subr.mxu0 0.0
    %462 = vmatpush2.msra.mxu0 0.0
    %463 = vmatprep.subr.mxu0 0.0
    %464 = vmatpush2.msra.mxu0 0.0
    %465 = vmatprep.subr.mxu0 0.0
    %466 = vmatpush2.msra.mxu0 0.0
    %467 = vmatprep.subr.mxu0 0.0
    %468 = vmatpush2.msra.mxu0 0.0
    %469 = vmatprep.mubr.f32.mxu0 0.0
    %470 = vmatmul.mubr.f32.gmra.mxu0 %v403
    %v471 = vpop.f32.mrf.mxu0
    %v472 = vadd.f32 0.0, %v471
    %v473 = vpop.f32.mrf.mxu0
    %474 = vdwg.mxu0
    %v477 = vunpack.c.l.s4 1966171168
    %v478 = vunpack.c.0.s8 %v477
    %v479 = vlaneseq
    %v480 = vshrl.u32 %v479, 7
    %v481 = vsub.s32 %v478, %v480
    %v482 = vrot.slane %v472, %v481
    %v483 = vcombine.high %v482, %v482
    %v485 = vunpack.c.l.s4 1966171168
    %v486 = vunpack.c.0.s8 %v485
    %v487 = vlaneseq
    %v488 = vshrl.u32 %v487, 7
    %v489 = vsub.s32 %v486, %v488
    %v490 = vrot.slane %v482, %v489
    %v492 = vunpack.c.l.s4 1966171168
    %v493 = vunpack.c.0.s8 %v492
    %v494 = vlaneseq
    %v495 = vshrl.u32 %v494, 7
    %v496 = vsub.s32 %v493, %v495
    %v497 = vrot.slane %v483, %v496
    %v498 = vlaneseq
    %v499 = vshrl.u32 %v498, 7
    %v500 = vsub.s32 0, %v499
    %v501 = vrot.slane %v490, %v500
    %v502 = vlaneseq
    %v503 = vshrl.u32 %v502, 7
    %v504 = vsub.s32 0, %v503
    %v505 = vrot.slane %v497, %v504
    %v508 = vadd.f32 %v384, %v501
    %v509 = vadd.f32 %v389, %v501
    %v510 = vadd.f32 %v394, %v505
    %v511 = vadd.f32 %v399, %v505
    %v512 = vlaneseq
    %v513 = vshrl.u32 %v512, 7
    %v514 = vsub.s32 0, %v513
    %v515 = vrot.slane %v92, %v514
    %v516 = vadd.f32 %v508, %v515
    %v517 = vadd.f32 %v509, %v515
    %v518 = vadd.f32 %v510, %v515
    %v519 = vadd.f32 %v511, %v515
    %v520 = vtanh.pop %v516
    %v521 = vtanh.pop %v517
    %v522 = vtanh.pop %v518
    %v523 = vtanh.pop %v519
    %v524 = vlaneseq
    %v525 = vshrl.u32 %v524, 7
    %v526 = vsub.s32 0, %v525
    %v527 = vrot.slane %v94, %v526
    %v528 = vmul.f32 %v520, %v527
    %v529 = vmul.f32 %v521, %v527
    %v530 = vmul.f32 %v522, %v527
    %v531 = vmul.f32 %v523, %v527
    %v532 = vsel %vm97, %v528, 0.0
    %533 = vadd.xlane.f32.xlu0 %v532
    %v534 = vpop.xlane.xlu0 %533
    %v535 = vsel %vm97, %v529, 0.0
    %536 = vadd.xlane.f32.xlu0 %v535
    %v537 = vpop.xlane.xlu0 %536
    %v538 = vsel %vm97, %v530, 0.0
    %539 = vadd.xlane.f32.xlu0 %v538
    %v540 = vpop.xlane.xlu0 %539
    %v541 = vsel %vm97, %v531, 0.0
    %542 = vadd.xlane.f32.xlu0 %v541
    %v543 = vpop.xlane.xlu0 %542
    %v548 = vlaneseq
    %v549 = vand.u32 %v548, 127
    %v550 = vlaneseq
    %v551 = vshrl.u32 %v550, 7
    %v552 = vsub.s32 %v549, %v551
    %v553 = vrot.slane %v534, %v552
    %v554 = vadd.s32 %v549, 4294967288
    %v555 = vlaneseq
    %v556 = vshrl.u32 %v555, 7
    %v557 = vsub.s32 %v554, %v556
    %v558 = vrot.slane %v537, %v557
    %vm559 = vcmask 130112
    %v560 = vsel %vm559, %v558, %v553
    %v561 = vlaneseq
    %v562 = vshrl.u32 %v561, 7
    %v563 = vsub.s32 %v549, %v562
    %v564 = vrot.slane %v540, %v563
    %v565 = vlaneseq
    %v566 = vshrl.u32 %v565, 7
    %v567 = vsub.s32 %v554, %v566
    %v568 = vrot.slane %v543, %v567
    %v569 = vsel %vm559, %v568, %v564
    %v570 = vsel %vm121, %v569, %v560
    %vm572 = vcmask 123904
    %v573 = vsel %vm572, %v570, -inf
    %574 = vmax.xlane.f32.xlu0 %v573
    %v575 = vpop.xlane.xlu0 %574
    %v577 = vlaneseq
    %v578 = vshrl.u32 %v577, 7
    %v579 = vsub.s32 0, %v578
    %v580 = vrot.slane %v575, %v579
    %v581 = vlaneseq
    %v582 = vshrl.u32 %v581, 7
    %v583 = vsub.s32 1, %v582
    %v584 = vrot.slane %v575, %v583
    %v587 = vsub.f32 %v534, %v580
    %v588 = vsub.f32 %v537, %v580
    %v589 = vsub.f32 %v540, %v584
    %v590 = vsub.f32 %v543, %v584
    %v591 = vmul.f32 %v587, 1.442695
    %v592 = vpow.pop %v591
    %v593 = vmul.f32 %v588, 1.442695
    %v594 = vpow.pop %v593
    %v595 = vmul.f32 %v589, 1.442695
    %v596 = vpow.pop %v595
    %v597 = vmul.f32 %v590, 1.442695
    %v598 = vpow.pop %v597
    %603 = vset.pattern.permute.xlu0 0
    %604 = vperm.xlu0 %603, %v592
    %v605 = vpop.permute.xlu0 %604
    %606 = vset.pattern.permute.xlu0 0
    %607 = vperm.xlu0 %606, %v594
    %v608 = vpop.permute.xlu0 %607
    %609 = vset.pattern.permute.xlu0 0
    %610 = vperm.xlu0 %609, %v596
    %v611 = vpop.permute.xlu0 %610
    %612 = vset.pattern.permute.xlu0 0
    %613 = vperm.xlu0 %612, %v598
    %v614 = vpop.permute.xlu0 %613
    %v615 = vlaneseq
    %v616 = vshrl.u32 %v615, 7
    %v617 = vsub.s32 %v549, %v616
    %v618 = vrot.slane %v605, %v617
    %v619 = vlaneseq
    %v620 = vshrl.u32 %v619, 7
    %v621 = vsub.s32 %v554, %v620
    %v622 = vrot.slane %v608, %v621
    %v623 = vsel %vm559, %v622, %v618
    %v624 = vlaneseq
    %v625 = vshrl.u32 %v624, 7
    %v626 = vsub.s32 %v549, %v625
    %v627 = vrot.slane %v611, %v626
    %v628 = vlaneseq
    %v629 = vshrl.u32 %v628, 7
    %v630 = vsub.s32 %v554, %v629
    %v631 = vrot.slane %v614, %v630
    %v632 = vsel %vm559, %v631, %v627
    %v633 = vsel %vm121, %v632, %v623
    %v635 = vsel %vm572, %v633, 0.0
    %636 = vadd.xlane.f32.xlu0 %v635
    %v637 = vpop.xlane.xlu0 %636
    %v639 = vlaneseq
    %v640 = vshrl.u32 %v639, 7
    %v641 = vsub.s32 0, %v640
    %v642 = vrot.slane %v637, %v641
    %v643 = vlaneseq
    %v644 = vshrl.u32 %v643, 7
    %v645 = vsub.s32 1, %v644
    %v646 = vrot.slane %v637, %v645
    %v649 = vrcp.pop %v642
    %v650 = vmul.f32 %v592, %v649
    %v651 = vmul.f32 %v594, %v649
    %v652 = vrcp.pop %v646
    %v653 = vmul.f32 %v596, %v652
    %v654 = vmul.f32 %v598, %v652
    %v655 = vmax.f32 %v534, %v537
    %v656 = vrot.slane %v655, 4
    %v657 = vmax.f32 %v655, %v656
    %v658 = vrot.slane %v657, 2
    %v659 = vmax.f32 %v657, %v658
    %v660 = vrot.slane %v659, 1
    %v661 = vmax.f32 %v659, %v660
    %v662 = vmax.f32 %v540, %v543
    %v663 = vrot.slane %v662, 4
    %v664 = vmax.f32 %v662, %v663
    %v665 = vrot.slane %v664, 2
    %v666 = vmax.f32 %v664, %v665
    %v667 = vrot.slane %v666, 1
    %v668 = vmax.f32 %v666, %v667
    %v669 = vsub.f32 %v534, %v661
    %v670 = vsub.f32 %v537, %v661
    %v671 = vsub.f32 %v540, %v668
    %v672 = vsub.f32 %v543, %v668
    %v673 = vmul.f32 %v669, 1.442695
    %v674 = vpow.pop %v673
    %v675 = vmul.f32 %v670, 1.442695
    %v676 = vpow.pop %v675
    %v677 = vmul.f32 %v671, 1.442695
    %v678 = vpow.pop %v677
    %v679 = vmul.f32 %v672, 1.442695
    %v680 = vpow.pop %v679
    %v681 = vadd.f32 %v674, %v676
    %v682 = vrot.slane %v681, 4
    %v683 = vadd.f32 %v681, %v682
    %v684 = vrot.slane %v683, 2
    %v685 = vadd.f32 %v683, %v684
    %v686 = vrot.slane %v685, 1
    %v687 = vadd.f32 %v685, %v686
    %v688 = vadd.f32 %v678, %v680
    %v689 = vrot.slane %v688, 4
    %v690 = vadd.f32 %v688, %v689
    %v691 = vrot.slane %v690, 2
    %v692 = vadd.f32 %v690, %v691
    %v693 = vrot.slane %v692, 1
    %v694 = vadd.f32 %v692, %v693
    %v695 = vrcp.pop %v687
    %v696 = vmul.f32 %v674, %v695
    %v697 = vmul.f32 %v676, %v695
    %v698 = vrcp.pop %v694
    %v699 = vmul.f32 %v678, %v698
    %v700 = vmul.f32 %v680, %v698
    %v701 = vmul.f32 %v696, %v301
    %v702 = vmul.f32 %v697, %v302
    %v703 = vmul.f32 %v699, %v303
    %v704 = vmul.f32 %v700, %v304
    %v705 = vsel %vm97, %v701, 0.0
    %v706 = vsel %vm97, %v702, 0.0
    %v707 = vadd.f32 %v705, %v706
    %v708 = vrot.slane %v707, 4
    %v709 = vadd.f32 %v707, %v708
    %v710 = vrot.slane %v709, 2
    %v711 = vadd.f32 %v709, %v710
    %v712 = vrot.slane %v711, 1
    %v713 = vadd.f32 %v711, %v712
    %v714 = vsel %vm97, %v703, 0.0
    %v715 = vsel %vm97, %v704, 0.0
    %v716 = vadd.f32 %v714, %v715
    %v717 = vrot.slane %v716, 4
    %v718 = vadd.f32 %v716, %v717
    %v719 = vrot.slane %v718, 2
    %v720 = vadd.f32 %v718, %v719
    %v721 = vrot.slane %v720, 1
    %v722 = vadd.f32 %v720, %v721
    %v725 = vsel %vm121, %v722, %v713
    %v727 = vadd.f32 %v195, %v725
    %v728 = vlaneseq
    %v729 = vshrl.u32 %v728, 7
    %v730 = vsub.s32 0, %v729
    %v731 = vrot.slane %v93, %v730
    %v733 = vsel %vm97, %v727, 0
    %735 = vmatprep.subr.mxu0 0.0
    %736 = vmatpush1.msra.mxu0 0.0
    %737 = vmatprep.subr.mxu0 0.0
    %738 = vmatpush1.msra.mxu0 0.0
    %739 = vmatprep.subr.mxu0 0.0
    %740 = vmatpush1.msra.mxu0 0.0
    %741 = vmatprep.subr.mxu0 0.0
    %742 = vmatpush1.msra.mxu0 0.0
    %743 = vmatprep.subr.mxu0 0.0
    %744 = vmatpush1.msra.mxu0 0.0
    %745 = vmatprep.subr.mxu0 0.0
    %746 = vmatpush1.msra.mxu0 0.0
    %747 = vmatprep.subr.mxu0 0.0
    %748 = vmatpush1.msra.mxu0 0.0
    %749 = vmatprep.subr.mxu0 0.0
    %750 = vmatpush1.msra.mxu0 0.0
    %751 = vmatprep.subr.mxu0 0.0
    %752 = vmatpush1.msra.mxu0 0.0
    %753 = vmatprep.subr.mxu0 0.0
    %754 = vmatpush1.msra.mxu0 0.0
    %755 = vmatprep.subr.mxu0 0.0
    %756 = vmatpush1.msra.mxu0 0.0
    %757 = vmatprep.subr.mxu0 0.0
    %758 = vmatpush1.msra.mxu0 0.0
    %759 = vmatprep.subr.mxu0 0.0
    %760 = vmatpush1.msra.mxu0 %v89
    %761 = vmatprep.subr.mxu0 0.0
    %762 = vmatpush1.msra.mxu0 %v88
    %763 = vmatprep.subr.mxu0 0.0
    %764 = vmatpush1.msra.mxu0 %v87
    %765 = vmatprep.subr.mxu0 0.0
    %766 = vmatpush1.msra.mxu0 %v86
    %767 = vmatprep.subr.mxu0 0.0
    %768 = vmatpush2.msra.mxu0 0.0
    %769 = vmatprep.subr.mxu0 0.0
    %770 = vmatpush2.msra.mxu0 0.0
    %771 = vmatprep.subr.mxu0 0.0
    %772 = vmatpush2.msra.mxu0 0.0
    %773 = vmatprep.subr.mxu0 0.0
    %774 = vmatpush2.msra.mxu0 0.0
    %775 = vmatprep.subr.mxu0 0.0
    %776 = vmatpush2.msra.mxu0 0.0
    %777 = vmatprep.subr.mxu0 0.0
    %778 = vmatpush2.msra.mxu0 0.0
    %779 = vmatprep.subr.mxu0 0.0
    %780 = vmatpush2.msra.mxu0 0.0
    %781 = vmatprep.subr.mxu0 0.0
    %782 = vmatpush2.msra.mxu0 0.0
    %783 = vmatprep.subr.mxu0 0.0
    %784 = vmatpush2.msra.mxu0 0.0
    %785 = vmatprep.subr.mxu0 0.0
    %786 = vmatpush2.msra.mxu0 0.0
    %787 = vmatprep.subr.mxu0 0.0
    %788 = vmatpush2.msra.mxu0 0.0
    %789 = vmatprep.subr.mxu0 0.0
    %790 = vmatpush2.msra.mxu0 0.0
    %791 = vmatprep.subr.mxu0 0.0
    %792 = vmatpush2.msra.mxu0 0.0
    %793 = vmatprep.subr.mxu0 0.0
    %794 = vmatpush2.msra.mxu0 0.0
    %795 = vmatprep.subr.mxu0 0.0
    %796 = vmatpush2.msra.mxu0 0.0
    %797 = vmatprep.subr.mxu0 0.0
    %798 = vmatpush2.msra.mxu0 0.0
    %799 = vmatprep.mubr.f32.mxu0 0.0
    %800 = vmatmul.mubr.f32.gmra.mxu0 %v733
    %v801 = vpop.f32.mrf.mxu0
    %v802 = vadd.f32 %v731, %v801
    %v803 = vpop.f32.mrf.mxu0
    %804 = vdwg.mxu0
    %809 = vset.pattern.permute.xlu0 0
    %810 = vperm.xlu0 %809, %v650
    %v811 = vpop.permute.xlu0 %810
    %812 = vset.pattern.permute.xlu0 0
    %813 = vperm.xlu0 %812, %v651
    %v814 = vpop.permute.xlu0 %813
    %815 = vset.pattern.permute.xlu0 0
    %816 = vperm.xlu0 %815, %v653
    %v817 = vpop.permute.xlu0 %816
    %818 = vset.pattern.permute.xlu0 0
    %819 = vperm.xlu0 %818, %v654
    %v820 = vpop.permute.xlu0 %819
    %v821 = vadd.s32 %v549, 4294967280
    %v822 = vlaneseq
    %v823 = vshrl.u32 %v822, 7
    %v824 = vsub.s32 %v821, %v823
    %v825 = vrot.slane %v811, %v824
    %v826 = vadd.s32 %v549, 4294967272
    %v827 = vlaneseq
    %v828 = vshrl.u32 %v827, 7
    %v829 = vsub.s32 %v826, %v828
    %v830 = vrot.slane %v814, %v829
    %vm831 = vcmask 261312
    %v832 = vsel %vm831, %v830, %v825
    %v833 = vlaneseq
    %v834 = vshrl.u32 %v833, 7
    %v835 = vsub.s32 %v821, %v834
    %v836 = vrot.slane %v817, %v835
    %v837 = vlaneseq
    %v838 = vshrl.u32 %v837, 7
    %v839 = vsub.s32 %v826, %v838
    %v840 = vrot.slane %v820, %v839
    %v841 = vsel %vm831, %v840, %v836
    %v842 = vsel %vm121, %v841, %v832
    %vm844 = vcmask 130048
    %v845 = vsel %vm844, %v802, %v842
    %v846 = vsel %vm97, %v845, 0.0
    %vm847 = vcmask 1041408
    %v848 = vsel %vm847, %v846, 0.0
    %849 = vst [vmem:[%s4] sm:$0xff] %v848
    // Predicated region
    $region34: #{san_baseline_forward.1} parent=1 // pred_check
      _
    $region35: #{san_baseline_forward.1} parent=1 // pred_check_branch
      %851 = sbr.rel (0) target = $region37
    $region36: #{san_baseline_forward.1} parent=1 // pred_region
      _
    $region37: #{san_baseline_forward.1} parent=1 // pred_fallthru
      _
    // Predicated region
    $region38: #{san_baseline_forward.1} parent=1 // pred_check
      _
    $region39: #{san_baseline_forward.1} parent=1 // pred_check_branch
      %853 = sbr.rel (0) target = $region41
    $region40: #{san_baseline_forward.1} parent=1 // pred_region
      _
    $region41: #{san_baseline_forward.1} parent=1 // pred_fallthru
      _
    %854 = vsyncpa [#allocation3], 1
    %855 = vsyncpa [#allocation5], 1
    %856 = vsyncpa [#allocation8], 1

</llo_original>
